<compile_context>
chip_gen: v7x
topology: tpu7x:2x2x1
jax: 0.10.0
libtpu: 0.0.40
codegen_flags: <defaults>
</compile_context>

<pallas_src>
import functools

import jax
import jax.numpy as jnp
from jax.experimental import pallas as pl
from jax.experimental.pallas import tpu as pltpu

LANES = 128
SUBLANES = 8
N_CORES = 2            # v7x has 2 TensorCores; harmless (sequential) on v5e/v6e.
MAX_ROW_TILE = 8192    # 8192 x 128 f32 = 4 MiB per input per grid step.


def _cdiv(a, b):
    return -(-a // b)


def _round_up(a, b):
    return _cdiv(a, b) * b


def _focal_loss_kernel(p_ref, t_ref, o_ref, *, alpha, gamma, gamma_int,
                       hard_labels, row_tile, steps_per_core, valid_rows,
                       needs_mask):
    s = pl.program_id(1)

    @pl.when(s == 0)
    def _():
        o_ref[...] = jnp.zeros_like(o_ref)

    p = p_ref[...]
    t = t_ref[...]

    if hard_labels:
        # Hard {0,1} labels: BCE = -log(p) if t == 1 else -log(1-p); 1 log/elem.
        pt = jnp.where(t >= 0.5, p, 1.0 - p)
        bce = jnp.minimum(-jnp.log(pt), 100.0)   # PyTorch clamps log at -100.
        # pt is used directly instead of exp(-bce); they differ only where the
        # clamp binds (pt == 0 vs exp(-100) ~ 3.7e-44) -- negligible.
    else:
        # Exact PyTorch formula (supports soft / label-smoothed targets).
        log_p = jnp.maximum(jnp.log(p), -100.0)
        log_1mp = jnp.maximum(jnp.log(1.0 - p), -100.0)
        bce = -(t * log_p + (1.0 - t) * log_1mp)
        pt = jnp.exp(-bce)

    one_m_pt = 1.0 - pt
    if gamma_int is not None:
        # Small integer gamma (default 2.0): repeated VPU multiplies, no pow/EUP.
        if gamma_int == 0:
            w = jnp.ones_like(one_m_pt)
        else:
            w = one_m_pt
            for _ in range(gamma_int - 1):
                w = w * one_m_pt
    else:
        w = jnp.power(one_m_pt, gamma)

    f_loss = alpha * w * bce

    if needs_mask:
        # Zero contributions from rows past the end of the (ragged) array:
        # ragged last Pallas block and clamped duplicate blocks read garbage.
        blk = pl.program_id(0) * steps_per_core + s
        row0 = blk * row_tile
        rid = jax.lax.broadcasted_iota(jnp.int32, (row_tile, LANES), 0)
        f_loss = jnp.where(row0 + rid < valid_rows, f_loss, 0.0)

    # VPU-only accumulation: collapse groups of 8 rows with vreg adds into the
    # resident per-core (8, 128) output block.  Cross-sublane / cross-lane
    # reduction happens exactly once, outside the kernel.
    o_ref[...] += jnp.sum(f_loss.reshape(-1, SUBLANES, LANES), axis=0)


def pointnet_weighted_focal_loss(preds, target, *, alpha=0.25, gamma=2.0,
                                 hard_labels=True):
    """Pallas TPU implementation of PointNetWeightedFocalLoss.forward.

    hard_labels=True assumes target values are in {0, 1} (1 transcendental per
    element).  Pass hard_labels=False for soft targets (exact PyTorch formula).
    """
    assert preds.shape == target.shape
    total = preds.size

    p_flat = preds.reshape(-1).astype(jnp.float32)
    t_flat = target.reshape(-1).astype(jnp.float32)   # no standalone bf16 cast

    # Lane-dense layout (rows, 128) with rows a multiple of 8.  Only pads up to
    # 1023 elements (none when numel % 1024 == 0); pad values p=1, t=1 give
    # bce = 0 and therefore contribute exactly 0 to the sum.
    rows = _round_up(_cdiv(total, LANES), SUBLANES)
    padded = rows * LANES
    if padded != total:
        # TODO(synk): this pad still materializes a copy; only triggers when
        # numel % 1024 != 0 (never for typical point-cloud shapes).
        pad = padded - total
        p_flat = jnp.pad(p_flat, (0, pad), constant_values=1.0)
        t_flat = jnp.pad(t_flat, (0, pad), constant_values=1.0)

    p2 = p_flat.reshape(rows, LANES)
    t2 = t_flat.reshape(rows, LANES)

    # Tiling: split rows across N_CORES (parallel axis), then row_tile-sized
    # steps (arbitrary axis).  row_tile <= rows always holds.
    row_tile = min(MAX_ROW_TILE, _round_up(_cdiv(rows, N_CORES), SUBLANES))
    steps_per_core = _cdiv(rows, N_CORES * row_tile)
    num_blocks = _cdiv(rows, row_tile)
    needs_mask = (N_CORES * steps_per_core * row_tile) != rows

    if N_CORES * steps_per_core > num_blocks:
        # Some (core, step) pairs fall past the last block: clamp the block
        # index (their contribution is fully masked to zero in the kernel).
        def in_map(c, s):
            return (jnp.minimum(c * steps_per_core + s, num_blocks - 1), 0)
    else:
        def in_map(c, s):
            return (c * steps_per_core + s, 0)

    gamma_f = float(gamma)
    gamma_int = (int(gamma_f)
                 if (gamma_f.is_integer() and 0.0 <= gamma_f <= 8.0) else None)

    kernel = functools.partial(
        _focal_loss_kernel,
        alpha=float(alpha),
        gamma=gamma_f,
        gamma_int=gamma_int,
        hard_labels=bool(hard_labels),
        row_tile=row_tile,
        steps_per_core=steps_per_core,
        valid_rows=rows,
        needs_mask=needs_mask,
    )

    partials = pl.pallas_call(
        kernel,
        out_shape=jax.ShapeDtypeStruct((N_CORES * SUBLANES, LANES), jnp.float32),
        grid_spec=pltpu.PrefetchScalarGridSpec(
            num_scalar_prefetch=0,
            grid=(N_CORES, steps_per_core),
            in_specs=[
                pl.BlockSpec((row_tile, LANES), in_map),
                pl.BlockSpec((row_tile, LANES), in_map),
            ],
            out_specs=pl.BlockSpec((SUBLANES, LANES), lambda c, s: (c, 0)),
        ),
        compiler_params=pltpu.CompilerParams(
            dimension_semantics=("parallel", "arbitrary"),
            vmem_limit_bytes=32 * 1024 * 1024,
        ),
    )(p2, t2)

    # Final cross-sublane / cross-lane reduce over 2*8*128 partials + mean.
    return jnp.sum(partials) * (1.0 / float(total))


def _reference(preds, target, alpha, gamma):
    p = preds.astype(jnp.float32)
    t = target.astype(jnp.float32)
    log_p = jnp.maximum(jnp.log(p), -100.0)
    log_1mp = jnp.maximum(jnp.log(1.0 - p), -100.0)
    bce = -(t * log_p + (1.0 - t) * log_1mp)
    pt = jnp.exp(-bce)
    return jnp.mean(alpha * (1.0 - pt) ** gamma * bce)


if __name__ == "__main__":
    # Deterministic "init" of the loss hyper-parameters (module __init__ args).
    ALPHA = 0.25
    GAMMA = 2.0

    key = jax.random.PRNGKey(0)
    k_p, k_t = jax.random.split(key)

    # PointNet per-point sigmoid outputs: batch=2, num_points=2048.
    B, N = 2, 2048
    preds = jax.nn.sigmoid(jax.random.normal(k_p, (B, N), dtype=jnp.float32))
    target = jax.random.bernoulli(k_t, p=0.3, shape=(B, N)).astype(jnp.float32)

    loss = pointnet_weighted_focal_loss(preds, target, alpha=ALPHA, gamma=GAMMA)
    loss = jax.block_until_ready(loss)

    ref = _reference(preds, target, ALPHA, GAMMA)
    assert jnp.allclose(loss, ref, rtol=1e-5, atol=1e-6), (loss, ref)

    print("KERNEL_OK")
</pallas_src>

<mosaic_0001>
module attributes {stable_mosaic.version = 11 : i64} {
  func.func @_focal_loss_kernel(%arg0: i32, %arg1: i32, %arg2: memref<16x128xf32, #tpu.memory_space<vmem>>, %arg3: memref<16x128xf32, #tpu.memory_space<vmem>>, %arg4: memref<8x128xf32, #tpu.memory_space<vmem>>) attributes {dimension_semantics = [#tpu.dimension_semantics<parallel>, #tpu.dimension_semantics<arbitrary>], iteration_bounds = array<i64: 2, 1>, scalar_prefetch = 0 : i64, scratch_operands = 0 : i64, tpu.core_type = #tpu.core_type<tc>, window_params = [{transform_indices = @transform_0, window_bounds = array<i64: 16, 128>}, {transform_indices = @transform_1, window_bounds = array<i64: 16, 128>}, {transform_indices = @transform_2, window_bounds = array<i64: 8, 128>}]} {
    %c0_i32 = arith.constant 0 : i32
    %0 = arith.cmpi eq, %arg1, %c0_i32 : i32
    %1 = arith.extui %0 : i1 to i32
    %c0_i32_0 = arith.constant 0 : i32
    %2 = arith.cmpi ne, %1, %c0_i32_0 : i32
    scf.if %2 {
      %cst_14 = arith.constant 0.000000e+00 : f32
      %26 = vector.broadcast %cst_14 : f32 to vector<8x128xf32>
      %c0_15 = arith.constant 0 : index
      %c0_16 = arith.constant 0 : index
      %27 = vector.load %arg4[%c0_15, %c0_16] : memref<8x128xf32, #tpu.memory_space<vmem>>, vector<8x128xf32>
      tpu.vector_store %arg4[%c0_15, %c0_16], %26 {strides = array<i32>} : memref<8x128xf32, #tpu.memory_space<vmem>>, vector<8x128xf32>,
    } else {
    }
    %c0 = arith.constant 0 : index
    %c0_1 = arith.constant 0 : index
    %3 = vector.load %arg2[%c0, %c0_1] : memref<16x128xf32, #tpu.memory_space<vmem>>, vector<16x128xf32>
    %c0_2 = arith.constant 0 : index
    %c0_3 = arith.constant 0 : index
    %4 = vector.load %arg3[%c0_2, %c0_3] : memref<16x128xf32, #tpu.memory_space<vmem>>, vector<16x128xf32>
    %cst = arith.constant 5.000000e-01 : f32
    %5 = vector.broadcast %cst : f32 to vector<16x128xf32>
    %6 = arith.cmpf oge, %4, %5 : vector<16x128xf32>
    %cst_4 = arith.constant 1.000000e+00 : f32
    %7 = vector.broadcast %cst_4 : f32 to vector<16x128xf32>
    %8 = arith.subf %7, %3 : vector<16x128xf32>
    %9 = arith.select %6, %3, %8 : vector<16x128xi1>, vector<16x128xf32>
    %10 = math.log %9 : vector<16x128xf32>
    %cst_5 = arith.constant 0.000000e+00 : f32
    %11 = vector.broadcast %cst_5 : f32 to vector<16x128xf32>
    %12 = arith.subf %11, %10 : vector<16x128xf32>
    %cst_6 = arith.constant 1.000000e+02 : f32
    %13 = vector.broadcast %cst_6 : f32 to vector<16x128xf32>
    %14 = arith.minimumf %12, %13 : vector<16x128xf32>
    %cst_7 = arith.constant 1.000000e+00 : f32
    %15 = vector.broadcast %cst_7 : f32 to vector<16x128xf32>
    %16 = arith.subf %15, %9 : vector<16x128xf32>
    %17 = arith.mulf %16, %16 : vector<16x128xf32>
    %cst_8 = arith.constant 2.500000e-01 : f32
    %18 = vector.broadcast %cst_8 : f32 to vector<16x128xf32>
    %19 = arith.mulf %18, %17 : vector<16x128xf32>
    %20 = arith.mulf %19, %14 : vector<16x128xf32>
    %c0_9 = arith.constant 0 : index
    %c0_10 = arith.constant 0 : index
    %21 = vector.load %arg4[%c0_9, %c0_10] : memref<8x128xf32, #tpu.memory_space<vmem>>, vector<8x128xf32>
    %22 = vector.shape_cast %20 : vector<16x128xf32> to vector<2x8x128xf32>
    %cst_11 = arith.constant dense<0.000000e+00> : vector<8x128xf32>
    %23 = vector.multi_reduction <add>, %22, %cst_11 [0] : vector<2x8x128xf32> to vector<8x128xf32>
    %24 = arith.addf %21, %23 : vector<8x128xf32>
    %c0_12 = arith.constant 0 : index
    %c0_13 = arith.constant 0 : index
    %25 = vector.load %arg4[%c0_12, %c0_13] : memref<8x128xf32, #tpu.memory_space<vmem>>, vector<8x128xf32>
    tpu.vector_store %arg4[%c0_12, %c0_13], %24 {strides = array<i32>} : memref<8x128xf32, #tpu.memory_space<vmem>>, vector<8x128xf32>,
    return
  }
  func.func @transform_0(%arg0: i32, %arg1: i32) -> (i32, i32) {
    %c1_i32 = arith.constant 1 : i32
    %0 = arith.muli %arg0, %c1_i32 : i32
    %1 = arith.addi %0, %arg1 : i32
    %c0_i32 = arith.constant 0 : i32
    %c0_i32_0 = arith.constant 0 : i32
    return %1, %c0_i32 : i32, i32
  }
  func.func @transform_1(%arg0: i32, %arg1: i32) -> (i32, i32) {
    %c1_i32 = arith.constant 1 : i32
    %0 = arith.muli %arg0, %c1_i32 : i32
    %1 = arith.addi %0, %arg1 : i32
    %c0_i32 = arith.constant 0 : i32
    %c0_i32_0 = arith.constant 0 : i32
    return %1, %c0_i32 : i32, i32
  }
  func.func @transform_2(%arg0: i32, %arg1: i32) -> (i32, i32) {
    %c0_i32 = arith.constant 0 : i32
    %c0_i32_0 = arith.constant 0 : i32
    return %arg0, %c0_i32 : i32, i32
  }
}

</mosaic_0001>

<llo_original>
// kernel: tpu_custom_call.1
$region0: #{tpu_custom_call.1}
  #allocation0 [shape = 'u32[]', space=smem, size = 0x4, offset = 0x4, fixed_abs, tag = 'smem constant byte address 0x4 - core index']
  #allocation1 [shape = 'u32[144,128]{1,0:T(1,128)}', space=vmem, size = 0x12000, scoped, tag = 'internal scratch']
  %s0 = inlined_call_operand.hbm [shape: f32[32,128], index: 0, kind: input, shape index: {}]
  %s1 = inlined_call_operand.hbm [shape: f32[32,128], index: 1, kind: input, shape index: {}]
  %s2 = inlined_call_operand.hbm [shape: f32[16,128], index: 2, kind: output, shape index: {}]
  %s3 = sld [smem:[#allocation0]]
  $region53: #{tpu_custom_call.1} parent=0
    _
  %s5 = ssub.s32 1, %s3
  %s6 = scalar_select 0, %s5, %s3
  $region1: #{tpu_custom_call.1} parent=0
    #allocation2 [shape = 'u8[16384]{0}', space=vmem, size = 0x4000, scoped, tag = 'input window, operand 0']
    #allocation3 [shape = 's32[2]{0}', space=sflag, size = 0x8, scoped, tag = 'scoped memory for tpu_custom_call.1']
    #allocation4 [shape = 's32[2]{0}', space=sflag, size = 0x8, scoped, tag = 'scoped memory for tpu_custom_call.1']
    #allocation5 [shape = 'u8[16384]{0}', space=vmem, size = 0x4000, scoped, tag = 'input window, operand 1']
    #allocation6 [shape = 's32[2]{0}', space=sflag, size = 0x8, scoped, tag = 'scoped memory for tpu_custom_call.1']
    #allocation7 [shape = 'u8[8192]{0}', space=vmem, size = 0x2000, scoped, tag = 'output window, operand 0']
    %7 = vsyncpa [#allocation3], 0
    %s8 = scalar_lea.sflag [#allocation3], 1
    %9 = vsyncpa %s8, 0
    %10 = vsyncpa [#allocation6], 0
    %s11 = scalar_lea.sflag [#allocation6], 1
    %12 = vsyncpa %s11, 0
    %13 = vsyncpa [#allocation4], 0
    %s14 = scalar_lea.sflag [#allocation4], 1
    %15 = vsyncpa %s14, 0
    loop: start=0, step=1, limit=4
    $region2: #{tpu_custom_call.1} parent=1 // loop_pre_header
      _
    $region3: #{tpu_custom_call.1} parent=1 // loop_header
      %s17 = sphi 0, %s21
      %p18 = scmp.ge.s32.totalorder %s17, 4
      %s24 = sphi 0, %s36
      %s25 = sphi 0, %s32
      %s26 = sphi 0, %s24
      %s27 = sphi 0, %s25
      %s28 = sphi 0, %s26
      %s29 = sphi 0, %s27
      %s41 = sphi 0, %s43
      %s44 = sphi 0, %s41
      %s45 = sphi 0, %s44
      %s61 = sphi 0, %s45
      %s69 = sphi 0, %s71
      %s72 = sphi 0, %s69
      %s73 = sphi 0, %s72
      %s89 = sphi 0, %s73
      %s95 = sphi 0, %s97
      %s98 = sphi 0, %s95
      %s99 = sphi 0, %s98
      %s115 = sphi 0, %s99
    $region4: #{tpu_custom_call.1} parent=1 // loop_header_branch
      %20 = sbr.rel (%p18) target = $region8
    $region5: #{tpu_custom_call.1} parent=1 // loop_body
      %s22 = ssub.s32 %s17, 1
      %s23 = ssub.s32 %s17, 2
      %s30 = sadd.s32 1, %s25
      %p31 = scmp.ge.s32.totalorder %s30, 1
      %s32 = scalar_select %p31, 0, %s30
      %s33 = sadd.s32 1, %s24
      %s34 = scalar_select %p31, %s33, %s24
      %p35 = scmp.ge.s32.totalorder %s34, 2
      %s36 = scalar_select %p35, 0, %s34
      %s37 = sadd.s32 %s24, %s25
      %s38 = sadd.s32 %s36, %s32
      %s39 = ssub.s32 %s37, %s38
      %p40 = scmp.eq.s32.totalorder %s39, 0
      %s42 = sadd.s32 %s41, 1
      %s43 = scalar_select %p40, %s41, %s42
      %p46 = pneg %p40
      %p47 = scmp.eq.s32.totalorder %s17, 1
      %p48 = por %p46, %p47
      %p49 = scmp.ne.s32.totalorder %s41, %s44
      %p50 = scmp.eq.s32.totalorder %s17, 0
      %p51 = por %p49, %p50
      %p52 = scmp.ne.s32.totalorder %s41, %s44
      %p53 = scmp.eq.s32.totalorder %s22, 1
      %p54 = por %p52, %p53
      %p55 = scmp.ne.s32.totalorder %s44, %s45
      %p56 = scmp.eq.s32.totalorder %s22, 0
      %p57 = por %p55, %p56
      %p58 = scmp.ne.s32.totalorder %s44, %s45
      %p59 = scmp.eq.s32.totalorder %s23, 1
      %p60 = por %p58, %p59
      %p62 = scmp.ne.s32.totalorder %s45, %s61
      %p63 = scmp.eq.s32.totalorder %s23, 0
      %p64 = por %p62, %p63
      %s65 = sadd.s32 %s24, %s25
      %s66 = sadd.s32 %s36, %s32
      %s67 = ssub.s32 %s65, %s66
      %p68 = scmp.eq.s32.totalorder %s67, 0
      %s70 = sadd.s32 %s69, 1
      %s71 = scalar_select %p68, %s69, %s70
      %p74 = pneg %p68
      %p75 = scmp.eq.s32.totalorder %s17, 1
      %p76 = por %p74, %p75
      %p77 = scmp.ne.s32.totalorder %s69, %s72
      %p78 = scmp.eq.s32.totalorder %s17, 0
      %p79 = por %p77, %p78
      %p80 = scmp.ne.s32.totalorder %s69, %s72
      %p81 = scmp.eq.s32.totalorder %s22, 1
      %p82 = por %p80, %p81
      %p83 = scmp.ne.s32.totalorder %s72, %s73
      %p84 = scmp.eq.s32.totalorder %s22, 0
      %p85 = por %p83, %p84
      %p86 = scmp.ne.s32.totalorder %s72, %s73
      %p87 = scmp.eq.s32.totalorder %s23, 1
      %p88 = por %p86, %p87
      %p90 = scmp.ne.s32.totalorder %s73, %s89
      %p91 = scmp.eq.s32.totalorder %s23, 0
      %p92 = por %p90, %p91
      %s93 = ssub.s32 %s24, %s36
      %p94 = scmp.eq.s32.totalorder %s93, 0
      %s96 = sadd.s32 %s95, 1
      %s97 = scalar_select %p94, %s95, %s96
      %p100 = pneg %p94
      %p101 = scmp.eq.s32.totalorder %s17, 1
      %p102 = por %p100, %p101
      %p103 = scmp.ne.s32.totalorder %s95, %s98
      %p104 = scmp.eq.s32.totalorder %s17, 0
      %p105 = por %p103, %p104
      %p106 = scmp.ne.s32.totalorder %s95, %s98
      %p107 = scmp.eq.s32.totalorder %s22, 1
      %p108 = por %p106, %p107
      %p109 = scmp.ne.s32.totalorder %s98, %s99
      %p110 = scmp.eq.s32.totalorder %s22, 0
      %p111 = por %p109, %p110
      %p112 = scmp.ne.s32.totalorder %s98, %s99
      %p113 = scmp.eq.s32.totalorder %s23, 1
      %p114 = por %p112, %p113
      %p116 = scmp.ne.s32.totalorder %s99, %s115
      %p117 = scmp.eq.s32.totalorder %s23, 0
      %p118 = por %p116, %p117
      %p119 = scmp.le.s32.totalorder 1, %s17
      %p120 = scmp.lt.s32.totalorder %s17, 3
      %p121 = pnand %p119, %p120
      %p122 = pneg %p121
      // Predicated region
      $region9: #{tpu_custom_call.1} parent=5 // pred_check
        _
      $region10: #{tpu_custom_call.1} parent=5 // pred_check_branch
        %124 = sbr.rel (%p121) target = $region12
      $region11: #{tpu_custom_call.1} parent=5 // pred_region
        %s125 = ssub.s32 %s17, 1
      $region12: #{tpu_custom_call.1} parent=5 // pred_fallthru
        _
      %p126 = scmp.lt.s32.totalorder %s17, 2
      // Predicated region
      $region13: #{tpu_custom_call.1} parent=5 // pred_check
        %p127 = pneg %p126
      $region14: #{tpu_custom_call.1} parent=5 // pred_check_branch
        %129 = sbr.rel (%p127) target = $region16
      $region15: #{tpu_custom_call.1} parent=5 // pred_region
        // Predicated region
        $region17: #{tpu_custom_call.1} parent=15 // pred_check
          %p130 = pneg %p51
        $region18: #{tpu_custom_call.1} parent=15 // pred_check_branch
          %132 = sbr.rel (%p130) target = $region20
        $region19: #{tpu_custom_call.1} parent=15 // pred_region
          %s133 = sand.u32 %s41, 1
          %s134 = scalar_lea.sflag [#allocation3], %s133
          %s135 = sand.u32 %s41, 1
          %s136 = smul.addr %s135, 16
          %s137 = scalar_lea.vmem [#allocation2], %s136
          %s138 = sadd.s32 %s24, %s25
          %s139 = smul.u32 2, %s138
          %s141 = ssub.s32 256, 256
          %142 = vsyncadd %s134, %s141
          %s143 = smul.addr %s139, 128
          %s144 = scalar_lea.hbm %s0, %s143
          %s145 = sshll.u32 %s137, 4
          %s146 = int_to_ptr.vmem [resolvable:$true] %s145
          %151 = dma.hbm_to_vmem [thread:$0]  %s144, 256, %s146, %s134, 128, 128, 8
        $region20: #{tpu_custom_call.1} parent=15 // pred_fallthru
          _
        // Predicated region
        $region21: #{tpu_custom_call.1} parent=15 // pred_check
          %p152 = pneg %p79
        $region22: #{tpu_custom_call.1} parent=15 // pred_check_branch
          %154 = sbr.rel (%p152) target = $region24
        $region23: #{tpu_custom_call.1} parent=15 // pred_region
          %s155 = sand.u32 %s69, 1
          %s156 = scalar_lea.sflag [#allocation6], %s155
          %s157 = sand.u32 %s69, 1
          %s158 = smul.addr %s157, 16
          %s159 = scalar_lea.vmem [#allocation5], %s158
          %s160 = sadd.s32 %s24, %s25
          %s161 = smul.u32 2, %s160
          %s163 = ssub.s32 256, 256
          %164 = vsyncadd %s156, %s163
          %s165 = smul.addr %s161, 128
          %s166 = scalar_lea.hbm %s1, %s165
          %s167 = sshll.u32 %s159, 4
          %s168 = int_to_ptr.vmem [resolvable:$true] %s167
          %173 = dma.hbm_to_vmem [thread:$0]  %s166, 256, %s168, %s156, 128, 128, 8
        $region24: #{tpu_custom_call.1} parent=15 // pred_fallthru
          _
      $region16: #{tpu_custom_call.1} parent=5 // pred_fallthru
        _
      %p174 = scmp.le.s32.totalorder 1, %s17
      %p175 = scmp.lt.s32.totalorder %s17, 3
      %p176 = pnand %p174, %p175
      %p177 = pneg %p176
      // Predicated region
      $region25: #{tpu_custom_call.1} parent=5 // pred_check
        _
      $region26: #{tpu_custom_call.1} parent=5 // pred_check_branch
        %179 = sbr.rel (%p176) target = $region28
      $region27: #{tpu_custom_call.1} parent=5 // pred_region
        %s180 = ssub.s32 %s17, 1
        %s181 = sand.u32 %s44, 1
        %s182 = scalar_lea.sflag [#allocation3], %s181
        %s183 = sand.u32 %s44, 1
        %s184 = smul.addr %s183, 16
        %s185 = scalar_lea.vmem [#allocation2], %s184
        // Predicated region
        $region29: #{tpu_custom_call.1} parent=27 // pred_check
          %p186 = pneg %p57
        $region30: #{tpu_custom_call.1} parent=27 // pred_check_branch
          %188 = sbr.rel (%p186) target = $region32
        $region31: #{tpu_custom_call.1} parent=27 // pred_region
          %189 = dma.done %s182, 256
        $region32: #{tpu_custom_call.1} parent=27 // pred_fallthru
          _
        %s190 = sand.u32 %s72, 1
        %s191 = scalar_lea.sflag [#allocation6], %s190
        %s192 = sand.u32 %s72, 1
        %s193 = smul.addr %s192, 16
        %s194 = scalar_lea.vmem [#allocation5], %s193
        // Predicated region
        $region33: #{tpu_custom_call.1} parent=27 // pred_check
          %p195 = pneg %p85
        $region34: #{tpu_custom_call.1} parent=27 // pred_check_branch
          %197 = sbr.rel (%p195) target = $region36
        $region35: #{tpu_custom_call.1} parent=27 // pred_region
          %198 = dma.done %s191, 256
        $region36: #{tpu_custom_call.1} parent=27 // pred_fallthru
          _
        %s199 = sand.u32 %s44, 1
        %s200 = scalar_lea.sflag [#allocation3], %s199
        %s201 = sand.u32 %s44, 1
        %s202 = smul.addr %s201, 16
        %s203 = scalar_lea.vmem [#allocation2], %s202
        %p204 = pneg %p57
        %p205 = pneg %p54
        %s206 = sand.u32 %s72, 1
        %s207 = scalar_lea.sflag [#allocation6], %s206
        %s208 = sand.u32 %s72, 1
        %s209 = smul.addr %s208, 16
        %s210 = scalar_lea.vmem [#allocation5], %s209
        %p211 = pneg %p85
        %p212 = pneg %p82
        %p213 = pneg %p111
        %p214 = pneg %p108
        %s215 = sand.u32 %s98, 1
        %s216 = scalar_lea.sflag [#allocation4], %s215
        %s217 = sand.u32 %s98, 1
        %s218 = smul.addr %s217, 8
        %s219 = scalar_lea.vmem [#allocation7], %s218
        %s220 = sadd.s32 %s26, %s27
        %s221 = smul.u32 2, %s220
        %s222 = sadd.s32 %s26, %s27
        %s223 = smul.u32 2, %s222
        %p224 = scmp.eq.s32.totalorder %s27, 0
        // Predicated region
        $region37: #{tpu_custom_call.1} parent=27 // pred_check
          %p225 = pneg %p224
        $region38: #{tpu_custom_call.1} parent=27 // pred_check_branch
          %227 = sbr.rel (%p225) target = $region40
        $region39: #{tpu_custom_call.1} parent=27 // pred_region
          %228 = vst [vmem:[%s219] sm:$0xff] 0.0
        $region40: #{tpu_custom_call.1} parent=27 // pred_fallthru
          _
        %v229 = vld [vmem:[%s185] sm:$0xff]
        %v230 = vld [vmem:[%s185 + $0x8] sm:$0xff]
        %v231 = vld [vmem:[%s194] sm:$0xff]
        %v232 = vld [vmem:[%s194 + $0x8] sm:$0xff]
        %vm233 = vcmp.ge.f32.partialorder %v231, 0.5
        %vm234 = vcmp.ge.f32.partialorder %v232, 0.5
        %v235 = vsub.f32 1.0, %v229
        %v236 = vsub.f32 1.0, %v230
        %v237 = vsel %vm233, %v229, %v235
        %v238 = vsel %vm234, %v230, %v236
        %v239 = vlog2.pop %v237
        %v240 = vmul.f32 %v239, 0.6931472
        %v241 = vlog2.pop %v238
        %v242 = vmul.f32 %v241, 0.6931472
        %v243 = vsub.f32 0.0, %v240
        %v244 = vsub.f32 0.0, %v242
        %v245 = vmin.f32 %v243, 100.0
        %v246 = vmin.f32 %v244, 100.0
        %v247 = vsub.f32 1.0, %v237
        %v248 = vsub.f32 1.0, %v238
        %v249 = vmul.f32 %v247, %v247
        %v250 = vmul.f32 %v248, %v248
        %v251 = vmul.f32 %v249, 0.25
        %v252 = vmul.f32 %v250, 0.25
        %v253 = vmul.f32 %v251, %v245
        %v254 = vmul.f32 %v252, %v246
        %v255 = vld [vmem:[%s219] sm:$0xff]
        %v256 = vadd.f32 %v253, %v254
        %v257 = vadd.f32 %v255, %v256
        %258 = vst [vmem:[%s219] sm:$0xff] %v257
        %s259 = sand.u32 %s98, 1
        %s260 = scalar_lea.sflag [#allocation4], %s259
        %s261 = sand.u32 %s98, 1
        %s262 = smul.addr %s261, 8
        %s263 = scalar_lea.vmem [#allocation7], %s262
        // Predicated region
        $region41: #{tpu_custom_call.1} parent=27 // pred_check
          %p264 = pneg %p108
        $region42: #{tpu_custom_call.1} parent=27 // pred_check_branch
          %266 = sbr.rel (%p264) target = $region44
        $region43: #{tpu_custom_call.1} parent=27 // pred_region
          %s268 = ssub.s32 128, 128
          %269 = vsyncadd %s260, %s268
          %s270 = smul.addr %s26, 128
          %s271 = scalar_lea.hbm %s2, %s270
          %s273 = sshll.u32 %s263, 4
          %s274 = int_to_ptr.vmem [resolvable:$true] %s273
          %276 = dma.vmem_to_hbm [thread:$0]  %s274, 128, %s271, %s260
        $region44: #{tpu_custom_call.1} parent=27 // pred_fallthru
          _
      $region28: #{tpu_custom_call.1} parent=5 // pred_fallthru
        _
      %p277 = scmp.le.s32.totalorder 2, %s17
      // Predicated region
      $region45: #{tpu_custom_call.1} parent=5 // pred_check
        %p278 = pneg %p277
      $region46: #{tpu_custom_call.1} parent=5 // pred_check_branch
        %280 = sbr.rel (%p278) target = $region48
      $region47: #{tpu_custom_call.1} parent=5 // pred_region
        %s281 = ssub.s32 %s17, 2
        // Predicated region
        $region49: #{tpu_custom_call.1} parent=47 // pred_check
          %p282 = pneg %p114
        $region50: #{tpu_custom_call.1} parent=47 // pred_check_branch
          %284 = sbr.rel (%p282) target = $region52
        $region51: #{tpu_custom_call.1} parent=47 // pred_region
          %s285 = sand.u32 %s99, 1
          %s286 = scalar_lea.sflag [#allocation4], %s285
          %s287 = sand.u32 %s99, 1
          %s288 = smul.addr %s287, 8
          %s289 = scalar_lea.vmem [#allocation7], %s288
          %290 = dma.done %s286, 128
        $region52: #{tpu_custom_call.1} parent=47 // pred_fallthru
          _
      $region48: #{tpu_custom_call.1} parent=5 // pred_fallthru
        _
    $region6: #{tpu_custom_call.1} parent=1 // loop_footer
      %s21 = sadd.s32 1, %s17
    $region7: #{tpu_custom_call.1} parent=1 // loop_footer_branch
      %16 = sbr.rel target = $region3
    $region8: #{tpu_custom_call.1} parent=1 // loop_exit
      _
    %291 = vsyncpa [#allocation3], 1
    %s292 = scalar_lea.sflag [#allocation3], 1
    %293 = vsyncpa %s292, 1
    %294 = vsyncpa [#allocation6], 1
    %s295 = scalar_lea.sflag [#allocation6], 1
    %296 = vsyncpa %s295, 1
    %297 = vsyncpa [#allocation4], 1
    %s298 = scalar_lea.sflag [#allocation4], 1
    %299 = vsyncpa %s298, 1

</llo_original>
